<compile_context>
chip_gen: v7x
topology: tpu7x:2x2x1
jax: 0.10.0
libtpu: 0.0.40
codegen_flags: <defaults>
</compile_context>

<pallas_src>
import functools

import jax
import jax.numpy as jnp
from jax.experimental import pallas as pl
from jax.experimental.pallas import tpu as pltpu

L_DEFAULT = -0.1
R_DEFAULT = 1.1


def _round_up(x: int, m: int) -> int:
    return ((x + m - 1) // m) * m


def _kuma_kernel(w_ref, bias_ref, x_ref, u_ref, o_ref, *, l, r):
    x = x_ref[...]                       # (TILE_N, D) f32
    w = w_ref[...]                       # (2, D)      f32  (row 0 = Wa, row 1 = Wb)

    # Single MXU contraction: (2, D) . (TILE_N, D)^T -> (2, TILE_N); N on lanes.
    logits = jax.lax.dot_general(
        w, x, dimension_numbers=(((1,), (1,)), ((), ())),
        preferred_element_type=jnp.float32)
    logits = logits + bias_ref[...]                      # (2, 1) lane-broadcast add

    # softplus(z) = max(z, 0) + log1p(exp(-|z|)) : one exp + one log1p, no overflow.
    sp = jnp.maximum(logits, 0.0) + jnp.log1p(jnp.exp(-jnp.abs(logits)))
    ab = jnp.clip(sp, 0.001, 1000.0)                     # (2, TILE_N)
    inv_ab = 1.0 / ab
    inv_a = inv_ab[0:1, :]                               # (1, TILE_N)
    inv_b = inv_ab[1:2, :]                               # (1, TILE_N)

    u = u_ref[0]                                         # (1, TILE_N), u in [0, 1)
    # (1 - u)^(1/a) = exp(log1p(-u) / a); log1p(-u) <= 0 and finite for u in [0,1).
    q = jnp.exp(jnp.log1p(-u) * inv_a)
    inner = jnp.maximum(1.0 - q, 0.0)
    # inner^(1/b) = exp(log(inner) / b); log(0) = -inf -> exp(-inf) = 0 (correct limit).
    k = jnp.exp(jnp.log(inner) * inv_b)

    t = l + (r - l) * k
    o_ref[0] = jnp.clip(t, 0.0, 1.0)


def kumaraswamy_forward(x, wa, ba, wb, bb, u, *, l=L_DEFAULT, r=R_DEFAULT,
                        tile_n=2048):
    """x: (B, S, D) f32; wa/wb: (D, 1); ba/bb: (1, 1); u: (B, S) -> (B, S)."""
    B, S, D = x.shape
    N = B * S

    # Fuse the two Linear layers: weights (2, D), bias (2, 1).
    w = jnp.concatenate(
        [wa.reshape(1, D), wb.reshape(1, D)], axis=0).astype(jnp.float32)
    bias = jnp.concatenate(
        [ba.reshape(1, 1), bb.reshape(1, 1)], axis=0).astype(jnp.float32)

    # Tile size: lane-dense multiple of 128; don't over-pad tiny inputs.
    assert tile_n % 128 == 0
    tn = min(tile_n, _round_up(N, 128))
    n_pad = _round_up(N, tn)
    g = n_pad // tn

    x_flat = x.reshape(N, D).astype(jnp.float32)
    u_flat = u.reshape(N).astype(jnp.float32)
    if n_pad != N:
        x_flat = jnp.pad(x_flat, ((0, n_pad - N), (0, 0)))
        u_flat = jnp.pad(u_flat, ((0, n_pad - N),))
    u3 = u_flat.reshape(g, 1, tn)

    kernel = functools.partial(_kuma_kernel, l=float(l), r=float(r))
    out = pl.pallas_call(
        kernel,
        out_shape=jax.ShapeDtypeStruct((g, 1, tn), jnp.float32),
        grid=(g,),
        in_specs=[
            pl.BlockSpec((2, D), lambda i: (0, 0)),          # fused weights (fetched once)
            pl.BlockSpec((2, 1), lambda i: (0, 0)),          # fused bias    (fetched once)
            pl.BlockSpec((tn, D), lambda i: (i, 0)),         # x row-tile
            pl.BlockSpec((1, 1, tn), lambda i: (i, 0, 0)),   # u lane-dense slab
        ],
        out_specs=pl.BlockSpec((1, 1, tn), lambda i: (i, 0, 0)),
        compiler_params=pltpu.CompilerParams(
            dimension_semantics=("parallel",),
            vmem_limit_bytes=32 * 1024 * 1024,
        ),
    )(w, bias, x_flat, u3)

    return out.reshape(n_pad)[:N].reshape(B, S)


def _reference(x, wa, ba, wb, bb, u, l=L_DEFAULT, r=R_DEFAULT):
    a_logit = jnp.einsum("bsd,do->bs", x, wa) + ba[0, 0]
    b_logit = jnp.einsum("bsd,do->bs", x, wb) + bb[0, 0]
    a = jnp.clip(jax.nn.softplus(a_logit), 0.001, 1000.0)
    b = jnp.clip(jax.nn.softplus(b_logit), 0.001, 1000.0)
    k = jnp.power(jnp.maximum(1.0 - jnp.power(1.0 - u, 1.0 / a), 0.0), 1.0 / b)
    t = l + (r - l) * k
    return jnp.clip(t, 0.0, 1.0)


if __name__ == "__main__":
    key = jax.random.PRNGKey(0)
    k_x, k_wa, k_ba, k_wb, k_bb, k_u, k_x2, k_u2 = jax.random.split(key, 8)

    D = 32  # in_features

    # Deterministic parameter init, mimicking nn.Linear default U(-1/sqrt(D), 1/sqrt(D)).
    bound = 1.0 / jnp.sqrt(jnp.float32(D))
    wa = jax.random.uniform(k_wa, (D, 1), jnp.float32, -bound, bound)
    ba = jax.random.uniform(k_ba, (1, 1), jnp.float32, -bound, bound)
    wb = jax.random.uniform(k_wb, (D, 1), jnp.float32, -bound, bound)
    bb = jax.random.uniform(k_bb, (1, 1), jnp.float32, -bound, bound)

    # Case 1: small shape (single tile).
    B, S = 2, 8
    x = jax.random.normal(k_x, (B, S, D), jnp.float32)
    u = jax.random.uniform(k_u, (B, S), jnp.float32)   # torch.rand(x.shape[:2]) equivalent
    h = jax.block_until_ready(kumaraswamy_forward(x, wa, ba, wb, bb, u))
    ref = _reference(x, wa, ba, wb, bb, u)
    assert h.shape == (B, S)
    assert jnp.allclose(h, ref, atol=2e-4, rtol=2e-4), \
        float(jnp.max(jnp.abs(h - ref)))

    # Case 2: larger shape exercising the grid (g > 1) and row padding.
    B2, S2 = 4, 1000   # N = 4000 -> tiles of 2048 rows, padded to 4096
    x2 = jax.random.normal(k_x2, (B2, S2, D), jnp.float32)
    u2 = jax.random.uniform(k_u2, (B2, S2), jnp.float32)
    h2 = jax.block_until_ready(kumaraswamy_forward(x2, wa, ba, wb, bb, u2))
    ref2 = _reference(x2, wa, ba, wb, bb, u2)
    assert h2.shape == (B2, S2)
    assert jnp.allclose(h2, ref2, atol=2e-4, rtol=2e-4), \
        float(jnp.max(jnp.abs(h2 - ref2)))

    print("KERNEL_OK")
</pallas_src>

<mosaic_0001>
module attributes {stable_mosaic.version = 11 : i64} {
  func.func @_kuma_kernel(%arg0: i32, %arg1: memref<2x32xf32, #tpu.memory_space<vmem>>, %arg2: memref<2x1xf32, #tpu.memory_space<vmem>>, %arg3: memref<128x32xf32, #tpu.memory_space<vmem>>, %arg4: memref<1x1x128xf32, #tpu.memory_space<vmem>>, %arg5: memref<1x1x128xf32, #tpu.memory_space<vmem>>) attributes {dimension_semantics = [#tpu.dimension_semantics<parallel>], iteration_bounds = array<i64: 1>, scalar_prefetch = 0 : i64, scratch_operands = 0 : i64, tpu.core_type = #tpu.core_type<tc>, window_params = [{pipeline_mode = #tpu.pipeline_mode<synchronous>, transform_indices = @transform_0, window_bounds = array<i64: 2, 32>}, {pipeline_mode = #tpu.pipeline_mode<synchronous>, transform_indices = @transform_1, window_bounds = array<i64: 2, 1>}, {transform_indices = @transform_2, window_bounds = array<i64: 128, 32>}, {transform_indices = @transform_3, window_bounds = array<i64: 1, 1, 128>}, {transform_indices = @transform_4, window_bounds = array<i64: 1, 1, 128>}]} {
    %c0 = arith.constant 0 : index
    %c0_0 = arith.constant 0 : index
    %0 = vector.load %arg3[%c0, %c0_0] : memref<128x32xf32, #tpu.memory_space<vmem>>, vector<128x32xf32>
    %c0_1 = arith.constant 0 : index
    %c0_2 = arith.constant 0 : index
    %1 = vector.load %arg1[%c0_1, %c0_2] : memref<2x32xf32, #tpu.memory_space<vmem>>, vector<2x32xf32>
    %cst = arith.constant dense<0.000000e+00> : vector<2x128xf32>
    %2 = tpu.matmul %1, %0, %cst {dimension_numbers = #tpu.dot_dimension_numbers<[1], [1], [0], [0], [0, 0, 1, 0], [], []>} : vector<2x32xf32>, vector<128x32xf32>, vector<2x128xf32> -> vector<2x128xf32>
    %c0_3 = arith.constant 0 : index
    %c0_4 = arith.constant 0 : index
    %3 = vector.load %arg2[%c0_3, %c0_4] : memref<2x1xf32, #tpu.memory_space<vmem>>, vector<2x1xf32>
    %4 = vector.broadcast %3 : vector<2x1xf32> to vector<2x128xf32>
    %5 = arith.addf %2, %4 : vector<2x128xf32>
    %cst_5 = arith.constant 0.000000e+00 : f32
    %6 = vector.broadcast %cst_5 : f32 to vector<2x128xf32>
    %7 = arith.maximumf %5, %6 : vector<2x128xf32>
    %8 = math.absf %5 : vector<2x128xf32>
    %cst_6 = arith.constant 0.000000e+00 : f32
    %9 = vector.broadcast %cst_6 : f32 to vector<2x128xf32>
    %10 = arith.subf %9, %8 : vector<2x128xf32>
    %11 = math.exp %10 : vector<2x128xf32>
    %12 = math.log1p %11 : vector<2x128xf32>
    %13 = arith.addf %7, %12 : vector<2x128xf32>
    %cst_7 = arith.constant 1.000000e-03 : f32
    %cst_8 = arith.constant 1.000000e+03 : f32
    %14 = vector.broadcast %cst_7 : f32 to vector<2x128xf32>
    %15 = arith.maximumf %14, %13 : vector<2x128xf32>
    %16 = vector.broadcast %cst_8 : f32 to vector<2x128xf32>
    %17 = arith.minimumf %16, %15 : vector<2x128xf32>
    %cst_9 = arith.constant 1.000000e+00 : f32
    %18 = vector.broadcast %cst_9 : f32 to vector<2x128xf32>
    %19 = arith.divf %18, %17 : vector<2x128xf32>
    %20 = vector.extract_strided_slice %19 {offsets = [0, 0], sizes = [1, 128], strides = [1, 1]} : vector<2x128xf32> to vector<1x128xf32>
    %21 = vector.extract_strided_slice %19 {offsets = [1, 0], sizes = [1, 128], strides = [1, 1]} : vector<2x128xf32> to vector<1x128xf32>
    %c0_10 = arith.constant 0 : index
    %c0_11 = arith.constant 0 : index
    %c0_12 = arith.constant 0 : index
    %22 = vector.load %arg4[%c0_10, %c0_11, %c0_12] : memref<1x1x128xf32, #tpu.memory_space<vmem>>, vector<1x1x128xf32>
    %23 = vector.shape_cast %22 : vector<1x1x128xf32> to vector<1x128xf32>
    %cst_13 = arith.constant 0.000000e+00 : f32
    %24 = vector.broadcast %cst_13 : f32 to vector<1x128xf32>
    %25 = arith.subf %24, %23 : vector<1x128xf32>
    %26 = math.log1p %25 : vector<1x128xf32>
    %27 = arith.mulf %26, %20 : vector<1x128xf32>
    %28 = math.exp %27 : vector<1x128xf32>
    %cst_14 = arith.constant 1.000000e+00 : f32
    %29 = vector.broadcast %cst_14 : f32 to vector<1x128xf32>
    %30 = arith.subf %29, %28 : vector<1x128xf32>
    %cst_15 = arith.constant 0.000000e+00 : f32
    %31 = vector.broadcast %cst_15 : f32 to vector<1x128xf32>
    %32 = arith.maximumf %30, %31 : vector<1x128xf32>
    %33 = math.log %32 : vector<1x128xf32>
    %34 = arith.mulf %33, %21 : vector<1x128xf32>
    %35 = math.exp %34 : vector<1x128xf32>
    %cst_16 = arith.constant 1.200000e+00 : f32
    %36 = vector.broadcast %cst_16 : f32 to vector<1x128xf32>
    %37 = arith.mulf %36, %35 : vector<1x128xf32>
    %cst_17 = arith.constant -1.000000e-01 : f32
    %38 = vector.broadcast %cst_17 : f32 to vector<1x128xf32>
    %39 = arith.addf %38, %37 : vector<1x128xf32>
    %cst_18 = arith.constant 0.000000e+00 : f32
    %cst_19 = arith.constant 1.000000e+00 : f32
    %40 = vector.broadcast %cst_18 : f32 to vector<1x128xf32>
    %41 = arith.maximumf %40, %39 : vector<1x128xf32>
    %42 = vector.broadcast %cst_19 : f32 to vector<1x128xf32>
    %43 = arith.minimumf %42, %41 : vector<1x128xf32>
    %c0_20 = arith.constant 0 : index
    %c0_21 = arith.constant 0 : index
    %c0_22 = arith.constant 0 : index
    %44 = vector.load %arg5[%c0_20, %c0_21, %c0_22] : memref<1x1x128xf32, #tpu.memory_space<vmem>>, vector<1x1x128xf32>
    %45 = vector.shape_cast %44 : vector<1x1x128xf32> to vector<1x128xf32>
    %46 = vector.shape_cast %43 : vector<1x128xf32> to vector<1x1x128xf32>
    tpu.vector_store %arg5[%c0_20, %c0_21, %c0_22], %46 {strides = array<i32>} : memref<1x1x128xf32, #tpu.memory_space<vmem>>, vector<1x1x128xf32>,
    return
  }
  func.func @transform_0(%arg0: i32) -> (i32, i32) {
    %c0_i32 = arith.constant 0 : i32
    %c0_i32_0 = arith.constant 0 : i32
    %c0_i32_1 = arith.constant 0 : i32
    return %c0_i32, %c0_i32_0 : i32, i32
  }
  func.func @transform_1(%arg0: i32) -> (i32, i32) {
    %c0_i32 = arith.constant 0 : i32
    %c0_i32_0 = arith.constant 0 : i32
    %c0_i32_1 = arith.constant 0 : i32
    return %c0_i32, %c0_i32_0 : i32, i32
  }
  func.func @transform_2(%arg0: i32) -> (i32, i32) {
    %c0_i32 = arith.constant 0 : i32
    %c0_i32_0 = arith.constant 0 : i32
    return %arg0, %c0_i32 : i32, i32
  }
  func.func @transform_3(%arg0: i32) -> (i32, i32, i32) {
    %c0_i32 = arith.constant 0 : i32
    %c0_i32_0 = arith.constant 0 : i32
    %c0_i32_1 = arith.constant 0 : i32
    return %arg0, %c0_i32, %c0_i32_0 : i32, i32, i32
  }
  func.func @transform_4(%arg0: i32) -> (i32, i32, i32) {
    %c0_i32 = arith.constant 0 : i32
    %c0_i32_0 = arith.constant 0 : i32
    %c0_i32_1 = arith.constant 0 : i32
    return %arg0, %c0_i32, %c0_i32_0 : i32, i32, i32
  }
}

</mosaic_0001>

<llo_original>
// kernel: tpu_custom_call.1
$region0: #{tpu_custom_call.1}
  #allocation0 [shape = 'u32[]', space=smem, size = 0x4, offset = 0x4, fixed_abs, tag = 'smem constant byte address 0x4 - core index']
  #allocation1 [shape = 'u32[144,128]{1,0:T(1,128)}', space=vmem, size = 0x12000, scoped, tag = 'internal scratch']
  %s0 = inlined_call_operand.vmem [shape: f32[2,32], index: 0, kind: input, shape index: {}]
  %s1 = inlined_call_operand.vmem [shape: f32[2,1], index: 1, kind: input, shape index: {}]
  %s2 = inlined_call_operand.vmem [shape: f32[128,32], index: 2, kind: input, shape index: {}]
  %s3 = inlined_call_operand.vmem [shape: f32[1,1,128], index: 3, kind: input, shape index: {}]
  %s4 = inlined_call_operand.hbm [shape: f32[1,1,128], index: 4, kind: output, shape index: {}]
  %s5 = sld [smem:[#allocation0]]
  $region26: #{tpu_custom_call.1} parent=0
    _
  %s7 = ssub.s32 1, %s5
  %s8 = scalar_select 0, %s7, %s5
  $region1: #{tpu_custom_call.1} parent=0
    #allocation2 [shape = 'u8[512]{0}', space=vmem, size = 0x400, scoped, tag = 'output window, operand 0, single buffered']
    #allocation3 [shape = 's32[1]{0}', space=sflag, size = 0x4, scoped, tag = 'scoped memory for tpu_custom_call.1']
    %9 = vsyncpa [#allocation3], 0
    // Predicated region
    $region2: #{tpu_custom_call.1} parent=1 // pred_check
      _
    $region3: #{tpu_custom_call.1} parent=1 // pred_check_branch
      %11 = sbr.rel (0) target = $region5
    $region4: #{tpu_custom_call.1} parent=1 // pred_region
      _
    $region5: #{tpu_custom_call.1} parent=1 // pred_fallthru
      _
    // Predicated region
    $region6: #{tpu_custom_call.1} parent=1 // pred_check
      _
    $region7: #{tpu_custom_call.1} parent=1 // pred_check_branch
      %13 = sbr.rel (0) target = $region9
    $region8: #{tpu_custom_call.1} parent=1 // pred_region
      _
    $region9: #{tpu_custom_call.1} parent=1 // pred_fallthru
      _
    // Predicated region
    $region10: #{tpu_custom_call.1} parent=1 // pred_check
      _
    $region11: #{tpu_custom_call.1} parent=1 // pred_check_branch
      %15 = sbr.rel (0) target = $region13
    $region12: #{tpu_custom_call.1} parent=1 // pred_region
      _
    $region13: #{tpu_custom_call.1} parent=1 // pred_fallthru
      _
    // Predicated region
    $region14: #{tpu_custom_call.1} parent=1 // pred_check
      _
    $region15: #{tpu_custom_call.1} parent=1 // pred_check_branch
      %17 = sbr.rel (0) target = $region17
    $region16: #{tpu_custom_call.1} parent=1 // pred_region
      _
    $region17: #{tpu_custom_call.1} parent=1 // pred_fallthru
      _
    %v18 = vld [vmem:[%s2] sm:$0xff]
    %v19 = vld [vmem:[%s2 + $0x8] sm:$0xff]
    %v20 = vld [vmem:[%s2 + $0x10] sm:$0xff]
    %v21 = vld [vmem:[%s2 + $0x18] sm:$0xff]
    %v22 = vld [vmem:[%s2 + $0x20] sm:$0xff]
    %v23 = vld [vmem:[%s2 + $0x28] sm:$0xff]
    %v24 = vld [vmem:[%s2 + $0x30] sm:$0xff]
    %v25 = vld [vmem:[%s2 + $0x38] sm:$0xff]
    %v26 = vld [vmem:[%s2 + $0x40] sm:$0xff]
    %v27 = vld [vmem:[%s2 + $0x48] sm:$0xff]
    %v28 = vld [vmem:[%s2 + $0x50] sm:$0xff]
    %v29 = vld [vmem:[%s2 + $0x58] sm:$0xff]
    %v30 = vld [vmem:[%s2 + $0x60] sm:$0xff]
    %v31 = vld [vmem:[%s2 + $0x68] sm:$0xff]
    %v32 = vld [vmem:[%s2 + $0x70] sm:$0xff]
    %v33 = vld [vmem:[%s2 + $0x78] sm:$0xff]
    %v34 = vld [vmem:[%s0] sm:$0x3]
    %v35 = vld [vmem:[%s1] sm:$0x3]
    %37 = vset.pattern.permute.xlu0 0
    %38 = vperm.xlu0 %37, %v35
    %v39 = vpop.permute.xlu0 %38
    %vm41 = vcmask 261120
    %v43 = vsel %vm41, %v34, 0
    %v46 = vsel %vm41, %v18, 0
    %v49 = vsel %vm41, %v19, 0
    %v52 = vsel %vm41, %v20, 0
    %v55 = vsel %vm41, %v21, 0
    %v58 = vsel %vm41, %v22, 0
    %v61 = vsel %vm41, %v23, 0
    %v64 = vsel %vm41, %v24, 0
    %v67 = vsel %vm41, %v25, 0
    %v70 = vsel %vm41, %v26, 0
    %v73 = vsel %vm41, %v27, 0
    %v76 = vsel %vm41, %v28, 0
    %v79 = vsel %vm41, %v29, 0
    %v82 = vsel %vm41, %v30, 0
    %v85 = vsel %vm41, %v31, 0
    %v88 = vsel %vm41, %v32, 0
    %v91 = vsel %vm41, %v33, 0
    %93 = vmatprep.subr.mxu0 0.0
    %94 = vmatpush1.xpose.msra.mxu0 %v46
    %95 = vmatprep.subr.mxu0 0.0
    %96 = vmatpush1.xpose.msra.mxu0 %v49
    %97 = vmatprep.subr.mxu0 0.0
    %98 = vmatpush1.xpose.msra.mxu0 %v52
    %99 = vmatprep.subr.mxu0 0.0
    %100 = vmatpush1.xpose.msra.mxu0 %v55
    %101 = vmatprep.subr.mxu0 0.0
    %102 = vmatpush1.xpose.msra.mxu0 %v58
    %103 = vmatprep.subr.mxu0 0.0
    %104 = vmatpush1.xpose.msra.mxu0 %v61
    %105 = vmatprep.subr.mxu0 0.0
    %106 = vmatpush1.xpose.msra.mxu0 %v64
    %107 = vmatprep.subr.mxu0 0.0
    %108 = vmatpush1.xpose.msra.mxu0 %v67
    %109 = vmatprep.subr.mxu0 0.0
    %110 = vmatpush1.xpose.msra.mxu0 %v70
    %111 = vmatprep.subr.mxu0 0.0
    %112 = vmatpush1.xpose.msra.mxu0 %v73
    %113 = vmatprep.subr.mxu0 0.0
    %114 = vmatpush1.xpose.msra.mxu0 %v76
    %115 = vmatprep.subr.mxu0 0.0
    %116 = vmatpush1.xpose.msra.mxu0 %v79
    %117 = vmatprep.subr.mxu0 0.0
    %118 = vmatpush1.xpose.msra.mxu0 %v82
    %119 = vmatprep.subr.mxu0 0.0
    %120 = vmatpush1.xpose.msra.mxu0 %v85
    %121 = vmatprep.subr.mxu0 0.0
    %122 = vmatpush1.xpose.msra.mxu0 %v88
    %123 = vmatprep.subr.mxu0 0.0
    %124 = vmatpush1.xpose.msra.mxu0 %v91
    %125 = vmatprep.subr.mxu0 0.0
    %126 = vmatpush1.xpose.msra.mxu0 0.0
    %127 = vmatprep.subr.mxu0 0.0
    %128 = vmatpush1.xpose.msra.mxu0 0.0
    %129 = vmatprep.subr.mxu0 0.0
    %130 = vmatpush1.xpose.msra.mxu0 0.0
    %131 = vmatprep.subr.mxu0 0.0
    %132 = vmatpush1.xpose.msra.mxu0 0.0
    %133 = vmatprep.subr.mxu0 0.0
    %134 = vmatpush1.xpose.msra.mxu0 0.0
    %135 = vmatprep.subr.mxu0 0.0
    %136 = vmatpush1.xpose.msra.mxu0 0.0
    %137 = vmatprep.subr.mxu0 0.0
    %138 = vmatpush1.xpose.msra.mxu0 0.0
    %139 = vmatprep.subr.mxu0 0.0
    %140 = vmatpush1.xpose.msra.mxu0 0.0
    %141 = vmatprep.subr.mxu0 0.0
    %142 = vmatpush1.xpose.msra.mxu0 0.0
    %143 = vmatprep.subr.mxu0 0.0
    %144 = vmatpush1.xpose.msra.mxu0 0.0
    %145 = vmatprep.subr.mxu0 0.0
    %146 = vmatpush1.xpose.msra.mxu0 0.0
    %147 = vmatprep.subr.mxu0 0.0
    %148 = vmatpush1.xpose.msra.mxu0 0.0
    %149 = vmatprep.subr.mxu0 0.0
    %150 = vmatpush1.xpose.msra.mxu0 0.0
    %151 = vmatprep.subr.mxu0 0.0
    %152 = vmatpush1.xpose.msra.mxu0 0.0
    %153 = vmatprep.subr.mxu0 0.0
    %154 = vmatpush1.xpose.msra.mxu0 0.0
    %155 = vmatprep.subr.mxu0 0.0
    %156 = vmatpush1.xpose.msra.mxu0 0.0
    %157 = vmatprep.mubr.f32.mxu0 0.0
    %158 = vmatmul.mubr.f32.gmra.mrb[0].mxu0 %v43
    %v159 = vpop.f32.mrb[0].mxu0
    %v160 = vadd.f32 %v39, %v159
    %v161 = vpop.f32.mrb[0].mxu0
    %162 = vdwg.mxu0
    %v163 = vmax.f32 %v160, 0.0
    %v164 = vand.u32 2147483647, %v160
    %v165 = vsub.f32 0.0, %v164
    %v166 = vmul.f32 %v165, 1.442695
    %v167 = vpow.pop %v166
    %v168 = vadd.f32 %v167, 1.0
    %v169 = vlog2.pop %v168
    %v170 = vmul.f32 %v169, 0.6931472
    %v171 = vmul.f32 -0.5, %v167
    %v172 = vadd.f32 %v171, 1.0
    %v173 = vmul.f32 %v172, %v167
    %v174 = vand.u32 2147483647, %v167
    %vm175 = vcmp.lt.f32.partialorder %v174, 0.0004427343
    %v176 = vsel %vm175, %v173, %v170
    %v177 = vadd.f32 %v163, %v176
    %v178 = vmax.f32 %v177, 0.001
    %v179 = vmin.f32 %v178, 1000.0
    %v180 = vrcp.pop %v179
    %v181 = vmul.f32 1.0, %v180
    %v182 = vld [vmem:[%s3] sm:$0x1]
    %v183 = vsub.f32 0.0, %v182
    %v184 = vadd.f32 %v183, 1.0
    %v185 = vlog2.pop %v184
    %v186 = vmul.f32 %v185, 0.6931472
    %v187 = vmul.f32 -0.5, %v183
    %v188 = vadd.f32 %v187, 1.0
    %v189 = vmul.f32 %v188, %v183
    %v190 = vand.u32 2147483647, %v183
    %vm191 = vcmp.lt.f32.partialorder %v190, 0.0004427343
    %v192 = vsel %vm191, %v189, %v186
    %v193 = vmul.f32 %v192, %v181
    %v194 = vmul.f32 %v193, 1.442695
    %v195 = vpow.pop %v194
    %v196 = vsub.f32 1.0, %v195
    %v197 = vmax.f32 %v196, 0.0
    %v198 = vlog2.pop %v197
    %v199 = vmul.f32 %v198, 0.6931472
    %v202 = vunpack.c.l.s4 1966171168
    %v203 = vunpack.c.0.s8 %v202
    %v204 = vlaneseq
    %v205 = vshrl.u32 %v204, 7
    %v206 = vsub.s32 %v203, %v205
    %v207 = vrot.slane %v181, %v206
    %v208 = vcombine.high %v207, %v207
    %v210 = vunpack.c.l.s4 1966171168
    %v211 = vunpack.c.0.s8 %v210
    %v212 = vlaneseq
    %v213 = vshrl.u32 %v212, 7
    %v214 = vsub.s32 %v211, %v213
    %v215 = vrot.slane %v208, %v214
    %v217 = vmul.f32 %v199, %v215
    %v218 = vmul.f32 %v217, 1.442695
    %v219 = vpow.pop %v218
    %v220 = vmul.f32 %v219, 1.2
    %v221 = vadd.f32 %v220, -0.1
    %v222 = vmax.f32 %v221, 0.0
    %v223 = vmin.f32 %v222, 1.0
    %224 = vst [vmem:[#allocation2] sm:$0x1] %v223
    // Predicated region
    $region18: #{tpu_custom_call.1} parent=1 // pred_check
      _
    $region19: #{tpu_custom_call.1} parent=1 // pred_check_branch
      %226 = sbr.rel (0) target = $region21
    $region20: #{tpu_custom_call.1} parent=1 // pred_region
      %s228 = ssub.s32 16, 16
      %229 = vsyncadd [#allocation3], %s228
      %s231 = sshll.u32 [#allocation2], 4
      %s232 = int_to_ptr.vmem [resolvable:$true] %s231
      %234 = dma.vmem_to_hbm [thread:$0]  %s232, 16, %s4, [#allocation3]
    $region21: #{tpu_custom_call.1} parent=1 // pred_fallthru
      _
    // Predicated region
    $region22: #{tpu_custom_call.1} parent=1 // pred_check
      _
    $region23: #{tpu_custom_call.1} parent=1 // pred_check_branch
      %236 = sbr.rel (0) target = $region25
    $region24: #{tpu_custom_call.1} parent=1 // pred_region
      %237 = dma.done [#allocation3], 16
    $region25: #{tpu_custom_call.1} parent=1 // pred_fallthru
      _
    %238 = vsyncpa [#allocation3], 1

</llo_original>
